<compile_context>
chip_gen: v7x
topology: tpu7x:2x2x1
jax: 0.10.0
libtpu: 0.0.40
codegen_flags: <defaults>
</compile_context>

<pallas_src>
import functools

import jax
import jax.numpy as jnp
from jax.experimental import pallas as pl
from jax.experimental.pallas import tpu as pltpu

LRELU_SLOPE = 0.1
KERNEL_SIZE = 3
DILATIONS = (1, 3)


def _round_up(v, m):
    return -(-v // m) * m


def _vmem_capacity_bytes():
    try:
        return int(pltpu.get_tpu_info().vmem_capacity_bytes)
    except Exception:
        return 64 * 1024 * 1024  # conservative default (v7x per-core VMEM)


def _auto_max_tile_t(c, vmem_bytes):
    # ~64 live bytes per (channel, column): double-buffered f32 in/out tiles
    # plus bf16 shifted copies and f32 accumulators; spend at most half VMEM.
    cols = (vmem_bytes // 2) // max(64 * c, 1)
    cols = max(128, min(4096, cols))
    return (cols // 128) * 128


def _leaky(v):
    # max(x, 0.1*x): one mul + one max (cheaper than compare+select).
    return jnp.maximum(v, LRELU_SLOPE * v)


def _resblock2_body(x_ref, halo_ref, w1_ref, b1_ref, w2_ref, b2_ref, mask_ref,
                    o_ref, *, tile_t, k, d1, d2, pad1, pad2, t_real, fold,
                    halo_resident):
    f32 = jnp.float32
    bf16 = jnp.bfloat16
    halo = pad1 + pad2
    j = pl.program_id(1)
    t0 = j * tile_t

    b1 = b1_ref[...].astype(f32)                      # (C, 1)
    b2 = b2_ref[...].astype(f32)

    def conv_dot(w_ref, pieces):
        # pieces: k arrays of identical shape (C, L) bf16; returns f32 (C, L).
        if fold:                                      # C < 128: fold taps into K
            rhs = jnp.concatenate(pieces, axis=0)     # (k*C, L)
            return jnp.dot(w_ref[...], rhs, preferred_element_type=f32)
        acc = jnp.dot(w_ref[0], pieces[0], preferred_element_type=f32)
        for tap in range(1, k):
            acc = acc + jnp.dot(w_ref[tap], pieces[tap],
                                preferred_element_type=f32)
        return acc

    # ------------- centre path: all but `halo` columns at each tile end ------
    xc = x_ref[...].astype(f32)                       # (C, TILE_T)
    ac = _leaky(xc).astype(bf16)

    def shift_cols(v, off):
        # out[:, s] = v[:, s + off] (cyclic wrap); the wrapped columns only
        # feed outputs that the edge path overwrites below.  (pltpu.roll would
        # also serve; concat-of-slices keeps the shift semantics explicit.)
        if off == 0:
            return v
        return jnp.concatenate([v[:, off:], v[:, :off]], axis=1)

    y1c = conv_dot(w1_ref,
                   [shift_cols(ac, tap * d1 - pad1) for tap in range(k)]) + b1
    x1c = y1c + xc                                    # first residual
    a2c = _leaky(x1c)
    if mask_ref is not None:                          # only when T was padded
        a2c = a2c * mask_ref[...]                     # zero columns >= T
    a2c = a2c.astype(bf16)
    y2c = conv_dot(w2_ref,
                   [shift_cols(a2c, tap * d2 - pad2) for tap in range(k)]) + b2
    o_ref[...] = (y2c + x1c).astype(o_ref.dtype)

    # ------------- edge path: exact `halo` columns at each tile end ----------
    h = halo_ref[j] if halo_resident else halo_ref[0]     # (C, 2*halo)
    hl = h[:, :halo].astype(f32)
    hr = h[:, halo:].astype(f32)

    e = halo                         # edge output width
    l1 = e + 2 * pad2                # intermediate (post-conv1) width

    def edge(x_ext, col0):
        # x_ext: (C, e + 2*halo) covering global cols [col0, col0 + e + 2*halo)
        # returns (C, e) exact outputs for global cols [col0+halo, col0+halo+e)
        a1 = _leaky(x_ext).astype(bf16)
        y1 = conv_dot(w1_ref, [a1[:, tap * d1: tap * d1 + l1]
                               for tap in range(k)]) + b1
        x1 = y1 + x_ext[:, pad1: pad1 + l1]
        # conv2's 'same' padding zero-pads the *intermediate* outside [0, T).
        col = jax.lax.broadcasted_iota(jnp.int32, (1, l1), 1) + (col0 + pad1)
        a2 = jnp.where((col >= 0) & (col < t_real), _leaky(x1), 0.0)
        a2 = a2.astype(bf16)
        y2 = conv_dot(w2_ref, [a2[:, tap * d2: tap * d2 + e]
                               for tap in range(k)]) + b2
        return (y2 + x1[:, pad2: pad2 + e]).astype(o_ref.dtype)

    xl = jnp.concatenate([hl, xc[:, : 2 * halo]], axis=1)            # (C, 3*halo)
    xr = jnp.concatenate([xc[:, tile_t - 2 * halo:], hr], axis=1)    # (C, 3*halo)
    o_ref[:, :e] = edge(xl, t0 - halo)
    o_ref[:, tile_t - e:] = edge(xr, t0 + tile_t - 2 * halo)


def _kernel_plain(x_ref, halo_ref, w1_ref, b1_ref, w2_ref, b2_ref, o_ref, **kw):
    _resblock2_body(x_ref, halo_ref, w1_ref, b1_ref, w2_ref, b2_ref, None,
                    o_ref, **kw)


def _kernel_masked(x_ref, halo_ref, w1_ref, b1_ref, w2_ref, b2_ref, mask_ref,
                   o_ref, **kw):
    _resblock2_body(x_ref, halo_ref, w1_ref, b1_ref, w2_ref, b2_ref, mask_ref,
                    o_ref, **kw)


def resblock2(x, w1, b1, w2, b2, *, kernel_size=KERNEL_SIZE, dilation=DILATIONS,
              max_tile_t=None):
    """x: (N, C, T).  w*: (C_out, C_in, K) (PyTorch Conv1d layout).  b*: (C,)."""
    n, c, t = x.shape
    k = kernel_size
    d1, d2 = dilation
    assert k % 2 == 1, "'same' padding formula (k-1)*d//2 requires odd kernel"
    pad1 = (k - 1) * d1 // 2
    pad2 = (k - 1) * d2 // 2
    halo = pad1 + pad2

    vmem_cap = _vmem_capacity_bytes()
    if max_tile_t is None:
        max_tile_t = _auto_max_tile_t(c, vmem_cap)
    max_tile_t = max(128, (max_tile_t // 128) * 128)

    tile_t = min(max_tile_t, _round_up(t, 128))
    nt = -(-t // tile_t)
    # Megacore balance (v7x has 2 TensorCores): prefer an even program count.
    if (n * nt) % 2 == 1:
        cand = _round_up(-(-t // (nt + 1)), 128)
        if cand >= 128 and -(-t // cand) == nt + 1:
            tile_t, nt = cand, nt + 1
    t_pad = nt * tile_t
    assert tile_t >= 2 * halo, "tile too small for the conv halo"

    x_in = x if t_pad == t else jnp.pad(x, ((0, 0), (0, 0), (0, t_pad - t)))

    # Per-tile halo columns [left halo | right halo]; zeros at sequence edges.
    xrs = x_in.reshape(n, c, nt, tile_t)
    zeros = jnp.zeros((n, c, 1, halo), x_in.dtype)
    left = jnp.concatenate([zeros, xrs[:, :, :nt - 1, tile_t - halo:]], axis=2)
    right = jnp.concatenate([xrs[:, :, 1:, :halo], zeros], axis=2)
    halos = jnp.transpose(jnp.concatenate([left, right], axis=-1), (0, 2, 1, 3))
    # (N, nT, C, 2*halo): keep resident per batch element when small (one DMA
    # per batch instead of one tiny DMA per tile), else stream per tile.
    halo_resident = nt * c * 2 * halo * halos.dtype.itemsize <= (1 << 20)
    if halo_resident:
        halo_spec = pl.BlockSpec((None, nt, c, 2 * halo), lambda i, j: (i, 0, 0, 0))
    else:
        halo_spec = pl.BlockSpec((None, 1, c, 2 * halo), lambda i, j: (i, j, 0, 0))

    # Weights: per-tap (K, C, C) matmuls once C fills the MXU contraction;
    # folded (C, K*C) for small C.  bf16 operands, f32 accumulation; bias f32.
    fold = c < 128
    if fold:
        w1k = jnp.transpose(w1, (0, 2, 1)).reshape(c, k * c).astype(jnp.bfloat16)
        w2k = jnp.transpose(w2, (0, 2, 1)).reshape(c, k * c).astype(jnp.bfloat16)
        w_spec = pl.BlockSpec((c, k * c), lambda i, j: (0, 0))
    else:
        w1k = jnp.transpose(w1, (2, 0, 1)).astype(jnp.bfloat16)   # (K, C, C)
        w2k = jnp.transpose(w2, (2, 0, 1)).astype(jnp.bfloat16)
        w_spec = pl.BlockSpec((k, c, c), lambda i, j: (0, 0, 0))
    b1k = b1.reshape(c, 1).astype(jnp.float32)
    b2k = b2.reshape(c, 1).astype(jnp.float32)
    b_spec = pl.BlockSpec((c, 1), lambda i, j: (0, 0))

    masked = t_pad != t
    statics = dict(tile_t=tile_t, k=k, d1=d1, d2=d2, pad1=pad1, pad2=pad2,
                   t_real=t, fold=fold, halo_resident=halo_resident)
    kernel = functools.partial(_kernel_masked if masked else _kernel_plain,
                               **statics)

    in_specs = [
        pl.BlockSpec((None, c, tile_t), lambda i, j: (i, 0, j)),   # x tile
        halo_spec,                                                 # halo cols
        w_spec, b_spec, w_spec, b_spec,                            # weights/bias
    ]
    args = [x_in, halos, w1k, b1k, w2k, b2k]
    if masked:
        mask = (jnp.arange(t_pad) < t).astype(jnp.float32)
        args.append(mask.reshape(nt, 1, tile_t))
        in_specs.append(pl.BlockSpec((None, 1, tile_t), lambda i, j: (j, 0, 0)))

    out = pl.pallas_call(
        kernel,
        out_shape=jax.ShapeDtypeStruct((n, c, t_pad), x.dtype),
        grid=(n, nt),
        in_specs=in_specs,
        out_specs=pl.BlockSpec((None, c, tile_t), lambda i, j: (i, 0, j)),
        compiler_params=pltpu.CompilerParams(
            dimension_semantics=("parallel", "parallel"),
            vmem_limit_bytes=min(int(vmem_cap * 3 // 4), 100 * 1024 * 1024)),
    )(*args)
    return out if t_pad == t else out[:, :, :t]


def ref_forward(x, w1, b1, w2, b2):
    """Pure-JAX reference mirroring the PyTorch forward.  Conv operands are
    cast to bf16 (f32 accumulation) to match the kernel's MXU precision."""
    def conv(inp, w, b, dil):
        pad = (KERNEL_SIZE - 1) * dil // 2
        y = jax.lax.conv_general_dilated(
            inp.astype(jnp.bfloat16), w.astype(jnp.bfloat16),
            window_strides=(1,), padding=[(pad, pad)], rhs_dilation=(dil,),
            dimension_numbers=("NCH", "OIH", "NCH"),
            preferred_element_type=jnp.float32)
        return y + b[None, :, None]

    x = x.astype(jnp.float32)
    for w, b, dil in ((w1, b1, DILATIONS[0]), (w2, b2, DILATIONS[1])):
        xt = jnp.where(x > 0, x, LRELU_SLOPE * x)
        x = conv(xt, w, b, dil) + x
    return x


if __name__ == "__main__":
    key = jax.random.PRNGKey(0)

    def make_params(pkey, c):
        kw1, kb1, kw2, kb2 = jax.random.split(pkey, 4)
        # init_weights in the original uses N(0, 0.01); weight_norm is absorbed
        # into the effective weight, so one weight tensor per conv suffices.
        w1 = 0.01 * jax.random.normal(kw1, (c, c, KERNEL_SIZE), jnp.float32)
        b1 = 0.01 * jax.random.normal(kb1, (c,), jnp.float32)
        w2 = 0.01 * jax.random.normal(kw2, (c, c, KERNEL_SIZE), jnp.float32)
        b2 = 0.01 * jax.random.normal(kb2, (c,), jnp.float32)
        return w1, b1, w2, b2

    # Case 1: small C (folded-tap path), T multiple of 128, two tilings.
    N, C, T = 2, 8, 512
    k1, k2, key = jax.random.split(key, 3)
    x = jax.random.normal(k1, (N, C, T), jnp.float32)
    w1, b1, w2, b2 = make_params(k2, C)
    ref = jax.block_until_ready(ref_forward(x, w1, b1, w2, b2))
    out_tiled = jax.block_until_ready(resblock2(x, w1, b1, w2, b2, max_tile_t=128))
    out_auto = jax.block_until_ready(resblock2(x, w1, b1, w2, b2))
    assert out_tiled.shape == (N, C, T) and out_auto.shape == (N, C, T)
    err_t = float(jnp.max(jnp.abs(out_tiled - out_auto)))
    assert jnp.allclose(out_tiled, out_auto, rtol=1e-4, atol=1e-4), (
        f"case1: tiled vs auto mismatch (max |err| = {err_t})")
    for out in (out_tiled, out_auto):
        err = float(jnp.max(jnp.abs(out - ref)))
        assert jnp.allclose(out, ref, rtol=2e-3, atol=2e-3), (
            f"case1: mismatch vs reference (max |err| = {err})")

    # Case 2: C=128 (per-tap MXU path), T not a multiple of 128 (padding +
    # column mask) and an odd single-batch grid (even-program heuristic).
    N2, C2, T2 = 1, 128, 300
    k3, k4, key = jax.random.split(key, 3)
    x2 = jax.random.normal(k3, (N2, C2, T2), jnp.float32)
    p2 = make_params(k4, C2)
    ref2 = jax.block_until_ready(ref_forward(x2, *p2))
    out2a = jax.block_until_ready(resblock2(x2, *p2))                  # auto tile
    out2b = jax.block_until_ready(resblock2(x2, *p2, max_tile_t=128))  # 128-tiles
    assert out2a.shape == (N2, C2, T2) and out2b.shape == (N2, C2, T2)
    err2 = float(jnp.max(jnp.abs(out2a - out2b)))
    assert jnp.allclose(out2a, out2b, rtol=1e-4, atol=1e-4), (
        f"case2: tiling mismatch (max |err| = {err2})")
    for out in (out2a, out2b):
        err = float(jnp.max(jnp.abs(out - ref2)))
        assert jnp.allclose(out, ref2, rtol=2e-3, atol=2e-3), (
            f"case2: mismatch vs reference (max |err| = {err})")

    print("KERNEL_OK")
</pallas_src>

<mosaic_0001>
module attributes {stable_mosaic.version = 11 : i64} {
  func.func @_kernel_plain(%arg0: i32, %arg1: i32, %arg2: memref<1x8x128xf32, #tpu.memory_space<vmem>>, %arg3: memref<1x4x8x8xf32, #tpu.memory_space<vmem>>, %arg4: memref<8x24xbf16, #tpu.memory_space<vmem>>, %arg5: memref<8x1xf32, #tpu.memory_space<vmem>>, %arg6: memref<8x24xbf16, #tpu.memory_space<vmem>>, %arg7: memref<8x1xf32, #tpu.memory_space<vmem>>, %arg8: memref<1x8x128xf32, #tpu.memory_space<vmem>>) attributes {dimension_semantics = [#tpu.dimension_semantics<parallel>, #tpu.dimension_semantics<parallel>], iteration_bounds = array<i64: 2, 4>, scalar_prefetch = 0 : i64, scratch_operands = 0 : i64, tpu.core_type = #tpu.core_type<tc>, window_params = [{transform_indices = @transform_0, window_bounds = array<i64: 1, 8, 128>}, {transform_indices = @transform_1, window_bounds = array<i64: 1, 4, 8, 8>}, {pipeline_mode = #tpu.pipeline_mode<synchronous>, transform_indices = @transform_2, window_bounds = array<i64: 8, 24>}, {pipeline_mode = #tpu.pipeline_mode<synchronous>, transform_indices = @transform_3, window_bounds = array<i64: 8, 1>}, {pipeline_mode = #tpu.pipeline_mode<synchronous>, transform_indices = @transform_4, window_bounds = array<i64: 8, 24>}, {pipeline_mode = #tpu.pipeline_mode<synchronous>, transform_indices = @transform_5, window_bounds = array<i64: 8, 1>}, {transform_indices = @transform_6, window_bounds = array<i64: 1, 8, 128>}]} {
    %c128_i32 = arith.constant 128 : i32
    %0 = arith.muli %arg1, %c128_i32 : i32
    %c0 = arith.constant 0 : index
    %c0_0 = arith.constant 0 : index
    %1 = vector.load %arg5[%c0, %c0_0] : memref<8x1xf32, #tpu.memory_space<vmem>>, vector<8x1xf32>
    %c0_1 = arith.constant 0 : index
    %c0_2 = arith.constant 0 : index
    %2 = vector.load %arg7[%c0_1, %c0_2] : memref<8x1xf32, #tpu.memory_space<vmem>>, vector<8x1xf32>
    %c0_3 = arith.constant 0 : index
    %c0_4 = arith.constant 0 : index
    %c0_5 = arith.constant 0 : index
    %3 = vector.load %arg2[%c0_3, %c0_4, %c0_5] : memref<1x8x128xf32, #tpu.memory_space<vmem>>, vector<1x8x128xf32>
    %4 = vector.shape_cast %3 : vector<1x8x128xf32> to vector<8x128xf32>
    %cst = arith.constant 1.000000e-01 : f32
    %5 = vector.broadcast %cst : f32 to vector<8x128xf32>
    %6 = arith.mulf %5, %4 : vector<8x128xf32>
    %7 = arith.maximumf %4, %6 : vector<8x128xf32>
    %8 = arith.truncf %7 : vector<8x128xf32> to vector<8x128xbf16>
    %9 = vector.extract_strided_slice %8 {offsets = [0, 127], sizes = [8, 1], strides = [1, 1]} : vector<8x128xbf16> to vector<8x1xbf16>
    %10 = vector.extract_strided_slice %8 {offsets = [0, 0], sizes = [8, 127], strides = [1, 1]} : vector<8x128xbf16> to vector<8x127xbf16>
    %11 = tpu.concatenate %9, %10 in 1 : vector<8x1xbf16>, vector<8x127xbf16> -> vector<8x128xbf16>
    %12 = vector.extract_strided_slice %8 {offsets = [0, 1], sizes = [8, 127], strides = [1, 1]} : vector<8x128xbf16> to vector<8x127xbf16>
    %13 = vector.extract_strided_slice %8 {offsets = [0, 0], sizes = [8, 1], strides = [1, 1]} : vector<8x128xbf16> to vector<8x1xbf16>
    %14 = tpu.concatenate %12, %13 in 1 : vector<8x127xbf16>, vector<8x1xbf16> -> vector<8x128xbf16>
    %15 = tpu.concatenate %11, %8, %14 in 0 : vector<8x128xbf16>, vector<8x128xbf16>, vector<8x128xbf16> -> vector<24x128xbf16>
    %c0_6 = arith.constant 0 : index
    %c0_7 = arith.constant 0 : index
    %16 = vector.load %arg4[%c0_6, %c0_7] : memref<8x24xbf16, #tpu.memory_space<vmem>>, vector<8x24xbf16>
    %cst_8 = arith.constant dense<0.000000e+00> : vector<8x128xf32>
    %17 = tpu.matmul %16, %15, %cst_8 {dimension_numbers = #tpu.dot_dimension_numbers<[1], [0], [0], [1], [0, 0, 1, 1], [], []>} : vector<8x24xbf16>, vector<24x128xbf16>, vector<8x128xf32> -> vector<8x128xf32>
    %18 = vector.broadcast %1 : vector<8x1xf32> to vector<8x128xf32>
    %19 = arith.addf %17, %18 : vector<8x128xf32>
    %20 = arith.addf %19, %4 : vector<8x128xf32>
    %cst_9 = arith.constant 1.000000e-01 : f32
    %21 = vector.broadcast %cst_9 : f32 to vector<8x128xf32>
    %22 = arith.mulf %21, %20 : vector<8x128xf32>
    %23 = arith.maximumf %20, %22 : vector<8x128xf32>
    %24 = arith.truncf %23 : vector<8x128xf32> to vector<8x128xbf16>
    %25 = vector.extract_strided_slice %24 {offsets = [0, 125], sizes = [8, 3], strides = [1, 1]} : vector<8x128xbf16> to vector<8x3xbf16>
    %26 = vector.extract_strided_slice %24 {offsets = [0, 0], sizes = [8, 125], strides = [1, 1]} : vector<8x128xbf16> to vector<8x125xbf16>
    %27 = tpu.concatenate %25, %26 in 1 : vector<8x3xbf16>, vector<8x125xbf16> -> vector<8x128xbf16>
    %28 = vector.extract_strided_slice %24 {offsets = [0, 3], sizes = [8, 125], strides = [1, 1]} : vector<8x128xbf16> to vector<8x125xbf16>
    %29 = vector.extract_strided_slice %24 {offsets = [0, 0], sizes = [8, 3], strides = [1, 1]} : vector<8x128xbf16> to vector<8x3xbf16>
    %30 = tpu.concatenate %28, %29 in 1 : vector<8x125xbf16>, vector<8x3xbf16> -> vector<8x128xbf16>
    %31 = tpu.concatenate %27, %24, %30 in 0 : vector<8x128xbf16>, vector<8x128xbf16>, vector<8x128xbf16> -> vector<24x128xbf16>
    %c0_10 = arith.constant 0 : index
    %c0_11 = arith.constant 0 : index
    %32 = vector.load %arg6[%c0_10, %c0_11] : memref<8x24xbf16, #tpu.memory_space<vmem>>, vector<8x24xbf16>
    %cst_12 = arith.constant dense<0.000000e+00> : vector<8x128xf32>
    %33 = tpu.matmul %32, %31, %cst_12 {dimension_numbers = #tpu.dot_dimension_numbers<[1], [0], [0], [1], [0, 0, 1, 1], [], []>} : vector<8x24xbf16>, vector<24x128xbf16>, vector<8x128xf32> -> vector<8x128xf32>
    %34 = vector.broadcast %2 : vector<8x1xf32> to vector<8x128xf32>
    %35 = arith.addf %33, %34 : vector<8x128xf32>
    %36 = arith.addf %35, %20 : vector<8x128xf32>
    %c0_13 = arith.constant 0 : index
    %c0_14 = arith.constant 0 : index
    %c0_15 = arith.constant 0 : index
    %37 = vector.load %arg8[%c0_13, %c0_14, %c0_15] : memref<1x8x128xf32, #tpu.memory_space<vmem>>, vector<1x8x128xf32>
    %38 = vector.shape_cast %37 : vector<1x8x128xf32> to vector<8x128xf32>
    %39 = vector.shape_cast %36 : vector<8x128xf32> to vector<1x8x128xf32>
    tpu.vector_store %arg8[%c0_13, %c0_14, %c0_15], %39 {strides = array<i32>} : memref<1x8x128xf32, #tpu.memory_space<vmem>>, vector<1x8x128xf32>,
    %c0_16 = arith.constant 0 : index
    %40 = arith.index_cast %arg1 : i32 to index
    %c0_17 = arith.constant 0 : index
    %c0_18 = arith.constant 0 : index
    %41 = vector.load %arg3[%c0_16, %40, %c0_17, %c0_18] : memref<1x4x8x8xf32, #tpu.memory_space<vmem>>, vector<1x1x8x8xf32>
    %42 = vector.shape_cast %41 : vector<1x1x8x8xf32> to vector<8x8xf32>
    %43 = vector.extract_strided_slice %42 {offsets = [0, 0], sizes = [8, 4], strides = [1, 1]} : vector<8x8xf32> to vector<8x4xf32>
    %44 = vector.extract_strided_slice %42 {offsets = [0, 4], sizes = [8, 4], strides = [1, 1]} : vector<8x8xf32> to vector<8x4xf32>
    %45 = vector.extract_strided_slice %4 {offsets = [0, 0], sizes = [8, 8], strides = [1, 1]} : vector<8x128xf32> to vector<8x8xf32>
    %46 = tpu.concatenate %43, %45 in 1 : vector<8x4xf32>, vector<8x8xf32> -> vector<8x12xf32>
    %47 = vector.extract_strided_slice %4 {offsets = [0, 120], sizes = [8, 8], strides = [1, 1]} : vector<8x128xf32> to vector<8x8xf32>
    %48 = tpu.concatenate %47, %44 in 1 : vector<8x8xf32>, vector<8x4xf32> -> vector<8x12xf32>
    %c4_i32 = arith.constant 4 : i32
    %49 = arith.subi %0, %c4_i32 : i32
    %cst_19 = arith.constant 1.000000e-01 : f32
    %50 = vector.broadcast %cst_19 : f32 to vector<8x12xf32>
    %51 = arith.mulf %50, %46 : vector<8x12xf32>
    %52 = arith.maximumf %46, %51 : vector<8x12xf32>
    %53 = arith.truncf %52 : vector<8x12xf32> to vector<8x12xbf16>
    %54 = vector.extract_strided_slice %53 {offsets = [0, 0], sizes = [8, 10], strides = [1, 1]} : vector<8x12xbf16> to vector<8x10xbf16>
    %55 = vector.extract_strided_slice %53 {offsets = [0, 1], sizes = [8, 10], strides = [1, 1]} : vector<8x12xbf16> to vector<8x10xbf16>
    %56 = vector.extract_strided_slice %53 {offsets = [0, 2], sizes = [8, 10], strides = [1, 1]} : vector<8x12xbf16> to vector<8x10xbf16>
    %57 = tpu.concatenate %54, %55, %56 in 0 : vector<8x10xbf16>, vector<8x10xbf16>, vector<8x10xbf16> -> vector<24x10xbf16>
    %c0_20 = arith.constant 0 : index
    %c0_21 = arith.constant 0 : index
    %58 = vector.load %arg4[%c0_20, %c0_21] : memref<8x24xbf16, #tpu.memory_space<vmem>>, vector<8x24xbf16>
    %cst_22 = arith.constant dense<0.000000e+00> : vector<8x10xf32>
    %59 = tpu.matmul %58, %57, %cst_22 {dimension_numbers = #tpu.dot_dimension_numbers<[1], [0], [0], [1], [0, 0, 1, 1], [], []>} : vector<8x24xbf16>, vector<24x10xbf16>, vector<8x10xf32> -> vector<8x10xf32>
    %60 = vector.broadcast %1 : vector<8x1xf32> to vector<8x10xf32>
    %61 = arith.addf %59, %60 : vector<8x10xf32>
    %62 = vector.extract_strided_slice %46 {offsets = [0, 1], sizes = [8, 10], strides = [1, 1]} : vector<8x12xf32> to vector<8x10xf32>
    %63 = arith.addf %61, %62 : vector<8x10xf32>
    %64 = tpu.iota {dimensions = array<i32: 1>} : vector<1x10xi32>
    %c1_i32 = arith.constant 1 : i32
    %65 = arith.addi %49, %c1_i32 : i32
    %66 = vector.broadcast %65 : i32 to vector<1x10xi32>
    %67 = arith.addi %64, %66 : vector<1x10xi32>
    %c0_i32 = arith.constant 0 : i32
    %68 = vector.broadcast %c0_i32 : i32 to vector<1x10xi32>
    %69 = arith.cmpi sge, %67, %68 : vector<1x10xi32>
    %c512_i32 = arith.constant 512 : i32
    %70 = vector.broadcast %c512_i32 : i32 to vector<1x10xi32>
    %71 = arith.cmpi slt, %67, %70 : vector<1x10xi32>
    %72 = arith.andi %69, %71 : vector<1x10xi1>
    %cst_23 = arith.constant 1.000000e-01 : f32
    %73 = vector.broadcast %cst_23 : f32 to vector<8x10xf32>
    %74 = arith.mulf %73, %63 : vector<8x10xf32>
    %75 = arith.maximumf %63, %74 : vector<8x10xf32>
    %cst_24 = arith.constant 0.000000e+00 : f32
    %76 = vector.shape_cast %72 : vector<1x10xi1> to vector<1x10xi1>
    %77 = vector.broadcast %76 : vector<1x10xi1> to vector<8x10xi1>
    %78 = vector.broadcast %cst_24 : f32 to vector<8x10xf32>
    %79 = arith.select %77, %75, %78 : vector<8x10xi1>, vector<8x10xf32>
    %80 = arith.truncf %79 : vector<8x10xf32> to vector<8x10xbf16>
    %81 = vector.extract_strided_slice %80 {offsets = [0, 0], sizes = [8, 4], strides = [1, 1]} : vector<8x10xbf16> to vector<8x4xbf16>
    %82 = vector.extract_strided_slice %80 {offsets = [0, 3], sizes = [8, 4], strides = [1, 1]} : vector<8x10xbf16> to vector<8x4xbf16>
    %83 = vector.extract_strided_slice %80 {offsets = [0, 6], sizes = [8, 4], strides = [1, 1]} : vector<8x10xbf16> to vector<8x4xbf16>
    %84 = tpu.concatenate %81, %82, %83 in 0 : vector<8x4xbf16>, vector<8x4xbf16>, vector<8x4xbf16> -> vector<24x4xbf16>
    %c0_25 = arith.constant 0 : index
    %c0_26 = arith.constant 0 : index
    %85 = vector.load %arg6[%c0_25, %c0_26] : memref<8x24xbf16, #tpu.memory_space<vmem>>, vector<8x24xbf16>
    %cst_27 = arith.constant dense<0.000000e+00> : vector<8x4xf32>
    %86 = tpu.matmul %85, %84, %cst_27 {dimension_numbers = #tpu.dot_dimension_numbers<[1], [0], [0], [1], [0, 0, 1, 1], [], []>} : vector<8x24xbf16>, vector<24x4xbf16>, vector<8x4xf32> -> vector<8x4xf32>
    %87 = vector.broadcast %2 : vector<8x1xf32> to vector<8x4xf32>
    %88 = arith.addf %86, %87 : vector<8x4xf32>
    %89 = vector.extract_strided_slice %63 {offsets = [0, 3], sizes = [8, 4], strides = [1, 1]} : vector<8x10xf32> to vector<8x4xf32>
    %90 = arith.addf %88, %89 : vector<8x4xf32>
    %c0_28 = arith.constant 0 : index
    %c0_29 = arith.constant 0 : index
    %c0_30 = arith.constant 0 : index
    %91 = vector.load %arg8[%c0_28, %c0_29, %c0_30] : memref<1x8x128xf32, #tpu.memory_space<vmem>>, vector<1x8x4xf32>
    %92 = vector.shape_cast %91 : vector<1x8x4xf32> to vector<8x4xf32>
    %93 = vector.shape_cast %90 : vector<8x4xf32> to vector<1x8x4xf32>
    tpu.vector_store %arg8[%c0_28, %c0_29, %c0_30], %93 {strides = array<i32>} : memref<1x8x128xf32, #tpu.memory_space<vmem>>, vector<1x8x4xf32>,
    %c128_i32_31 = arith.constant 128 : i32
    %94 = arith.addi %0, %c128_i32_31 : i32
    %c8_i32 = arith.constant 8 : i32
    %95 = arith.subi %94, %c8_i32 : i32
    %cst_32 = arith.constant 1.000000e-01 : f32
    %96 = vector.broadcast %cst_32 : f32 to vector<8x12xf32>
    %97 = arith.mulf %96, %48 : vector<8x12xf32>
    %98 = arith.maximumf %48, %97 : vector<8x12xf32>
    %99 = arith.truncf %98 : vector<8x12xf32> to vector<8x12xbf16>
    %100 = vector.extract_strided_slice %99 {offsets = [0, 0], sizes = [8, 10], strides = [1, 1]} : vector<8x12xbf16> to vector<8x10xbf16>
    %101 = vector.extract_strided_slice %99 {offsets = [0, 1], sizes = [8, 10], strides = [1, 1]} : vector<8x12xbf16> to vector<8x10xbf16>
    %102 = vector.extract_strided_slice %99 {offsets = [0, 2], sizes = [8, 10], strides = [1, 1]} : vector<8x12xbf16> to vector<8x10xbf16>
    %103 = tpu.concatenate %100, %101, %102 in 0 : vector<8x10xbf16>, vector<8x10xbf16>, vector<8x10xbf16> -> vector<24x10xbf16>
    %c0_33 = arith.constant 0 : index
    %c0_34 = arith.constant 0 : index
    %104 = vector.load %arg4[%c0_33, %c0_34] : memref<8x24xbf16, #tpu.memory_space<vmem>>, vector<8x24xbf16>
    %cst_35 = arith.constant dense<0.000000e+00> : vector<8x10xf32>
    %105 = tpu.matmul %104, %103, %cst_35 {dimension_numbers = #tpu.dot_dimension_numbers<[1], [0], [0], [1], [0, 0, 1, 1], [], []>} : vector<8x24xbf16>, vector<24x10xbf16>, vector<8x10xf32> -> vector<8x10xf32>
    %106 = vector.broadcast %1 : vector<8x1xf32> to vector<8x10xf32>
    %107 = arith.addf %105, %106 : vector<8x10xf32>
    %108 = vector.extract_strided_slice %48 {offsets = [0, 1], sizes = [8, 10], strides = [1, 1]} : vector<8x12xf32> to vector<8x10xf32>
    %109 = arith.addf %107, %108 : vector<8x10xf32>
    %110 = tpu.iota {dimensions = array<i32: 1>} : vector<1x10xi32>
    %c1_i32_36 = arith.constant 1 : i32
    %111 = arith.addi %95, %c1_i32_36 : i32
    %112 = vector.broadcast %111 : i32 to vector<1x10xi32>
    %113 = arith.addi %110, %112 : vector<1x10xi32>
    %c0_i32_37 = arith.constant 0 : i32
    %114 = vector.broadcast %c0_i32_37 : i32 to vector<1x10xi32>
    %115 = arith.cmpi sge, %113, %114 : vector<1x10xi32>
    %c512_i32_38 = arith.constant 512 : i32
    %116 = vector.broadcast %c512_i32_38 : i32 to vector<1x10xi32>
    %117 = arith.cmpi slt, %113, %116 : vector<1x10xi32>
    %118 = arith.andi %115, %117 : vector<1x10xi1>
    %cst_39 = arith.constant 1.000000e-01 : f32
    %119 = vector.broadcast %cst_39 : f32 to vector<8x10xf32>
    %120 = arith.mulf %119, %109 : vector<8x10xf32>
    %121 = arith.maximumf %109, %120 : vector<8x10xf32>
    %cst_40 = arith.constant 0.000000e+00 : f32
    %122 = vector.shape_cast %118 : vector<1x10xi1> to vector<1x10xi1>
    %123 = vector.broadcast %122 : vector<1x10xi1> to vector<8x10xi1>
    %124 = vector.broadcast %cst_40 : f32 to vector<8x10xf32>
    %125 = arith.select %123, %121, %124 : vector<8x10xi1>, vector<8x10xf32>
    %126 = arith.truncf %125 : vector<8x10xf32> to vector<8x10xbf16>
    %127 = vector.extract_strided_slice %126 {offsets = [0, 0], sizes = [8, 4], strides = [1, 1]} : vector<8x10xbf16> to vector<8x4xbf16>
    %128 = vector.extract_strided_slice %126 {offsets = [0, 3], sizes = [8, 4], strides = [1, 1]} : vector<8x10xbf16> to vector<8x4xbf16>
    %129 = vector.extract_strided_slice %126 {offsets = [0, 6], sizes = [8, 4], strides = [1, 1]} : vector<8x10xbf16> to vector<8x4xbf16>
    %130 = tpu.concatenate %127, %128, %129 in 0 : vector<8x4xbf16>, vector<8x4xbf16>, vector<8x4xbf16> -> vector<24x4xbf16>
    %c0_41 = arith.constant 0 : index
    %c0_42 = arith.constant 0 : index
    %131 = vector.load %arg6[%c0_41, %c0_42] : memref<8x24xbf16, #tpu.memory_space<vmem>>, vector<8x24xbf16>
    %cst_43 = arith.constant dense<0.000000e+00> : vector<8x4xf32>
    %132 = tpu.matmul %131, %130, %cst_43 {dimension_numbers = #tpu.dot_dimension_numbers<[1], [0], [0], [1], [0, 0, 1, 1], [], []>} : vector<8x24xbf16>, vector<24x4xbf16>, vector<8x4xf32> -> vector<8x4xf32>
    %133 = vector.broadcast %2 : vector<8x1xf32> to vector<8x4xf32>
    %134 = arith.addf %132, %133 : vector<8x4xf32>
    %135 = vector.extract_strided_slice %109 {offsets = [0, 3], sizes = [8, 4], strides = [1, 1]} : vector<8x10xf32> to vector<8x4xf32>
    %136 = arith.addf %134, %135 : vector<8x4xf32>
    %c0_44 = arith.constant 0 : index
    %c0_45 = arith.constant 0 : index
    %c124 = arith.constant 124 : index
    %137 = vector.load %arg8[%c0_44, %c0_45, %c124] : memref<1x8x128xf32, #tpu.memory_space<vmem>>, vector<1x8x4xf32>
    %138 = vector.shape_cast %137 : vector<1x8x4xf32> to vector<8x4xf32>
    %139 = vector.shape_cast %136 : vector<8x4xf32> to vector<1x8x4xf32>
    tpu.vector_store %arg8[%c0_44, %c0_45, %c124], %139 {strides = array<i32>} : memref<1x8x128xf32, #tpu.memory_space<vmem>>, vector<1x8x4xf32>,
    return
  }
  func.func @transform_0(%arg0: i32, %arg1: i32) -> (i32, i32, i32) {
    %c0_i32 = arith.constant 0 : i32
    %c0_i32_0 = arith.constant 0 : i32
    return %arg0, %c0_i32, %arg1 : i32, i32, i32
  }
  func.func @transform_1(%arg0: i32, %arg1: i32) -> (i32, i32, i32, i32) {
    %c0_i32 = arith.constant 0 : i32
    %c0_i32_0 = arith.constant 0 : i32
    %c0_i32_1 = arith.constant 0 : i32
    %c0_i32_2 = arith.constant 0 : i32
    return %arg0, %c0_i32, %c0_i32_0, %c0_i32_1 : i32, i32, i32, i32
  }
  func.func @transform_2(%arg0: i32, %arg1: i32) -> (i32, i32) {
    %c0_i32 = arith.constant 0 : i32
    %c0_i32_0 = arith.constant 0 : i32
    %c0_i32_1 = arith.constant 0 : i32
    return %c0_i32, %c0_i32_0 : i32, i32
  }
  func.func @transform_3(%arg0: i32, %arg1: i32) -> (i32, i32) {
    %c0_i32 = arith.constant 0 : i32
    %c0_i32_0 = arith.constant 0 : i32
    %c0_i32_1 = arith.constant 0 : i32
    return %c0_i32, %c0_i32_0 : i32, i32
  }
  func.func @transform_4(%arg0: i32, %arg1: i32) -> (i32, i32) {
    %c0_i32 = arith.constant 0 : i32
    %c0_i32_0 = arith.constant 0 : i32
    %c0_i32_1 = arith.constant 0 : i32
    return %c0_i32, %c0_i32_0 : i32, i32
  }
  func.func @transform_5(%arg0: i32, %arg1: i32) -> (i32, i32) {
    %c0_i32 = arith.constant 0 : i32
    %c0_i32_0 = arith.constant 0 : i32
    %c0_i32_1 = arith.constant 0 : i32
    return %c0_i32, %c0_i32_0 : i32, i32
  }
  func.func @transform_6(%arg0: i32, %arg1: i32) -> (i32, i32, i32) {
    %c0_i32 = arith.constant 0 : i32
    %c0_i32_0 = arith.constant 0 : i32
    return %arg0, %c0_i32, %arg1 : i32, i32, i32
  }
}

</mosaic_0001>

<llo_original>
// kernel: tpu_custom_call.1
$region0: #{tpu_custom_call.1}
  #allocation0 [shape = 'u32[]', space=smem, size = 0x4, offset = 0x4, fixed_abs, tag = 'smem constant byte address 0x4 - core index']
  #allocation1 [shape = 'u32[144,128]{1,0:T(1,128)}', space=vmem, size = 0x12000, scoped, tag = 'internal scratch']
  %s0 = inlined_call_operand.hbm [shape: f32[2,8,512], index: 0, kind: input, shape index: {}]
  %s1 = inlined_call_operand.hbm [shape: f32[2,4,8,8], index: 1, kind: input, shape index: {}]
  %s2 = inlined_call_operand.vmem [shape: bf16[8,24], index: 2, kind: input, shape index: {}]
  %s3 = inlined_call_operand.vmem [shape: f32[8,1], index: 3, kind: input, shape index: {}]
  %s4 = inlined_call_operand.vmem [shape: bf16[8,24], index: 4, kind: input, shape index: {}]
  %s5 = inlined_call_operand.vmem [shape: f32[8,1], index: 5, kind: input, shape index: {}]
  %s6 = inlined_call_operand.hbm [shape: f32[2,8,512], index: 6, kind: output, shape index: {}]
  %s7 = sld [smem:[#allocation0]]
  $region65: #{tpu_custom_call.1} parent=0
    _
  %s9 = ssub.s32 1, %s7
  %s10 = scalar_select 0, %s9, %s7
  $region1: #{tpu_custom_call.1} parent=0
    #allocation2 [shape = 'u8[8192]{0}', space=vmem, size = 0x2000, scoped, tag = 'input window, operand 0']
    #allocation3 [shape = 's32[2]{0}', space=sflag, size = 0x8, scoped, tag = 'scoped memory for tpu_custom_call.1']
    #allocation4 [shape = 's32[2]{0}', space=sflag, size = 0x8, scoped, tag = 'scoped memory for tpu_custom_call.1']
    #allocation5 [shape = 'u8[32768]{0}', space=vmem, size = 0x8000, scoped, tag = 'input window, operand 1']
    #allocation6 [shape = 's32[2]{0}', space=sflag, size = 0x8, scoped, tag = 'scoped memory for tpu_custom_call.1']
    #allocation7 [shape = 'u8[8192]{0}', space=vmem, size = 0x2000, scoped, tag = 'output window, operand 0']
    %11 = vsyncpa [#allocation3], 0
    %s12 = scalar_lea.sflag [#allocation3], 1
    %13 = vsyncpa %s12, 0
    %14 = vsyncpa [#allocation6], 0
    %s15 = scalar_lea.sflag [#allocation6], 1
    %16 = vsyncpa %s15, 0
    %17 = vsyncpa [#allocation4], 0
    %s18 = scalar_lea.sflag [#allocation4], 1
    %19 = vsyncpa %s18, 0
    loop: start=0, step=1, limit=10
    $region2: #{tpu_custom_call.1} parent=1 // loop_pre_header
      _
    $region3: #{tpu_custom_call.1} parent=1 // loop_header
      %s21 = sphi 0, %s25
      %p22 = scmp.ge.s32.totalorder %s21, 10
      %s28 = sphi 0, %s40
      %s29 = sphi 0, %s36
      %s30 = sphi 0, %s28
      %s31 = sphi 0, %s29
      %s32 = sphi 0, %s30
      %s33 = sphi 0, %s31
      %s45 = sphi 0, %s47
      %s48 = sphi 0, %s45
      %s49 = sphi 0, %s48
      %s65 = sphi 0, %s49
      %s71 = sphi 0, %s73
      %s74 = sphi 0, %s71
      %s75 = sphi 0, %s74
      %s91 = sphi 0, %s75
      %s95 = sphi 0, %s95
      %s97 = sphi 0, %s95
      %s98 = sphi 0, %s97
      %s112 = sphi 0, %s98
      %s116 = sphi 0, %s116
      %s118 = sphi 0, %s116
      %s119 = sphi 0, %s118
      %s133 = sphi 0, %s119
      %s137 = sphi 0, %s137
      %s139 = sphi 0, %s137
      %s140 = sphi 0, %s139
      %s154 = sphi 0, %s140
      %s158 = sphi 0, %s158
      %s160 = sphi 0, %s158
      %s161 = sphi 0, %s160
      %s175 = sphi 0, %s161
      %s183 = sphi 0, %s185
      %s186 = sphi 0, %s183
      %s187 = sphi 0, %s186
      %s203 = sphi 0, %s187
    $region4: #{tpu_custom_call.1} parent=1 // loop_header_branch
      %24 = sbr.rel (%p22) target = $region8
    $region5: #{tpu_custom_call.1} parent=1 // loop_body
      %s26 = ssub.s32 %s21, 1
      %s27 = ssub.s32 %s21, 2
      %s34 = sadd.s32 1, %s29
      %p35 = scmp.ge.s32.totalorder %s34, 4
      %s36 = scalar_select %p35, 0, %s34
      %s37 = sadd.s32 1, %s28
      %s38 = scalar_select %p35, %s37, %s28
      %p39 = scmp.ge.s32.totalorder %s38, 2
      %s40 = scalar_select %p39, 0, %s38
      %s41 = ssub.s32 %s28, %s40
      %s42 = ssub.s32 %s29, %s36
      %s43 = sor.u32 %s41, %s42
      %p44 = scmp.eq.s32.totalorder %s43, 0
      %s46 = sadd.s32 %s45, 1
      %s47 = scalar_select %p44, %s45, %s46
      %p50 = pneg %p44
      %p51 = scmp.eq.s32.totalorder %s21, 7
      %p52 = por %p50, %p51
      %p53 = scmp.ne.s32.totalorder %s45, %s48
      %p54 = scmp.eq.s32.totalorder %s21, 0
      %p55 = por %p53, %p54
      %p56 = scmp.ne.s32.totalorder %s45, %s48
      %p57 = scmp.eq.s32.totalorder %s26, 7
      %p58 = por %p56, %p57
      %p59 = scmp.ne.s32.totalorder %s48, %s49
      %p60 = scmp.eq.s32.totalorder %s26, 0
      %p61 = por %p59, %p60
      %p62 = scmp.ne.s32.totalorder %s48, %s49
      %p63 = scmp.eq.s32.totalorder %s27, 7
      %p64 = por %p62, %p63
      %p66 = scmp.ne.s32.totalorder %s49, %s65
      %p67 = scmp.eq.s32.totalorder %s27, 0
      %p68 = por %p66, %p67
      %s69 = ssub.s32 %s28, %s40
      %p70 = scmp.eq.s32.totalorder %s69, 0
      %s72 = sadd.s32 %s71, 1
      %s73 = scalar_select %p70, %s71, %s72
      %p76 = pneg %p70
      %p77 = scmp.eq.s32.totalorder %s21, 7
      %p78 = por %p76, %p77
      %p79 = scmp.ne.s32.totalorder %s71, %s74
      %p80 = scmp.eq.s32.totalorder %s21, 0
      %p81 = por %p79, %p80
      %p82 = scmp.ne.s32.totalorder %s71, %s74
      %p83 = scmp.eq.s32.totalorder %s26, 7
      %p84 = por %p82, %p83
      %p85 = scmp.ne.s32.totalorder %s74, %s75
      %p86 = scmp.eq.s32.totalorder %s26, 0
      %p87 = por %p85, %p86
      %p88 = scmp.ne.s32.totalorder %s74, %s75
      %p89 = scmp.eq.s32.totalorder %s27, 7
      %p90 = por %p88, %p89
      %p92 = scmp.ne.s32.totalorder %s75, %s91
      %p93 = scmp.eq.s32.totalorder %s27, 0
      %p94 = por %p92, %p93
      %s96 = sadd.s32 %s95, 1
      %p99 = scmp.eq.s32.totalorder %s21, 7
      %p100 = scmp.ne.s32.totalorder %s95, %s97
      %p101 = scmp.eq.s32.totalorder %s21, 0
      %p102 = por %p100, %p101
      %p103 = scmp.ne.s32.totalorder %s95, %s97
      %p104 = scmp.eq.s32.totalorder %s26, 7
      %p105 = por %p103, %p104
      %p106 = scmp.ne.s32.totalorder %s97, %s98
      %p107 = scmp.eq.s32.totalorder %s26, 0
      %p108 = por %p106, %p107
      %p109 = scmp.ne.s32.totalorder %s97, %s98
      %p110 = scmp.eq.s32.totalorder %s27, 7
      %p111 = por %p109, %p110
      %p113 = scmp.ne.s32.totalorder %s98, %s112
      %p114 = scmp.eq.s32.totalorder %s27, 0
      %p115 = por %p113, %p114
      %s117 = sadd.s32 %s116, 1
      %p120 = scmp.eq.s32.totalorder %s21, 7
      %p121 = scmp.ne.s32.totalorder %s116, %s118
      %p122 = scmp.eq.s32.totalorder %s21, 0
      %p123 = por %p121, %p122
      %p124 = scmp.ne.s32.totalorder %s116, %s118
      %p125 = scmp.eq.s32.totalorder %s26, 7
      %p126 = por %p124, %p125
      %p127 = scmp.ne.s32.totalorder %s118, %s119
      %p128 = scmp.eq.s32.totalorder %s26, 0
      %p129 = por %p127, %p128
      %p130 = scmp.ne.s32.totalorder %s118, %s119
      %p131 = scmp.eq.s32.totalorder %s27, 7
      %p132 = por %p130, %p131
      %p134 = scmp.ne.s32.totalorder %s119, %s133
      %p135 = scmp.eq.s32.totalorder %s27, 0
      %p136 = por %p134, %p135
      %s138 = sadd.s32 %s137, 1
      %p141 = scmp.eq.s32.totalorder %s21, 7
      %p142 = scmp.ne.s32.totalorder %s137, %s139
      %p143 = scmp.eq.s32.totalorder %s21, 0
      %p144 = por %p142, %p143
      %p145 = scmp.ne.s32.totalorder %s137, %s139
      %p146 = scmp.eq.s32.totalorder %s26, 7
      %p147 = por %p145, %p146
      %p148 = scmp.ne.s32.totalorder %s139, %s140
      %p149 = scmp.eq.s32.totalorder %s26, 0
      %p150 = por %p148, %p149
      %p151 = scmp.ne.s32.totalorder %s139, %s140
      %p152 = scmp.eq.s32.totalorder %s27, 7
      %p153 = por %p151, %p152
      %p155 = scmp.ne.s32.totalorder %s140, %s154
      %p156 = scmp.eq.s32.totalorder %s27, 0
      %p157 = por %p155, %p156
      %s159 = sadd.s32 %s158, 1
      %p162 = scmp.eq.s32.totalorder %s21, 7
      %p163 = scmp.ne.s32.totalorder %s158, %s160
      %p164 = scmp.eq.s32.totalorder %s21, 0
      %p165 = por %p163, %p164
      %p166 = scmp.ne.s32.totalorder %s158, %s160
      %p167 = scmp.eq.s32.totalorder %s26, 7
      %p168 = por %p166, %p167
      %p169 = scmp.ne.s32.totalorder %s160, %s161
      %p170 = scmp.eq.s32.totalorder %s26, 0
      %p171 = por %p169, %p170
      %p172 = scmp.ne.s32.totalorder %s160, %s161
      %p173 = scmp.eq.s32.totalorder %s27, 7
      %p174 = por %p172, %p173
      %p176 = scmp.ne.s32.totalorder %s161, %s175
      %p177 = scmp.eq.s32.totalorder %s27, 0
      %p178 = por %p176, %p177
      %s179 = ssub.s32 %s28, %s40
      %s180 = ssub.s32 %s29, %s36
      %s181 = sor.u32 %s179, %s180
      %p182 = scmp.eq.s32.totalorder %s181, 0
      %s184 = sadd.s32 %s183, 1
      %s185 = scalar_select %p182, %s183, %s184
      %p188 = pneg %p182
      %p189 = scmp.eq.s32.totalorder %s21, 7
      %p190 = por %p188, %p189
      %p191 = scmp.ne.s32.totalorder %s183, %s186
      %p192 = scmp.eq.s32.totalorder %s21, 0
      %p193 = por %p191, %p192
      %p194 = scmp.ne.s32.totalorder %s183, %s186
      %p195 = scmp.eq.s32.totalorder %s26, 7
      %p196 = por %p194, %p195
      %p197 = scmp.ne.s32.totalorder %s186, %s187
      %p198 = scmp.eq.s32.totalorder %s26, 0
      %p199 = por %p197, %p198
      %p200 = scmp.ne.s32.totalorder %s186, %s187
      %p201 = scmp.eq.s32.totalorder %s27, 7
      %p202 = por %p200, %p201
      %p204 = scmp.ne.s32.totalorder %s187, %s203
      %p205 = scmp.eq.s32.totalorder %s27, 0
      %p206 = por %p204, %p205
      %p207 = scmp.le.s32.totalorder 1, %s21
      %p208 = scmp.lt.s32.totalorder %s21, 9
      %p209 = pnand %p207, %p208
      %p210 = pneg %p209
      // Predicated region
      $region9: #{tpu_custom_call.1} parent=5 // pred_check
        _
      $region10: #{tpu_custom_call.1} parent=5 // pred_check_branch
        %212 = sbr.rel (%p209) target = $region12
      $region11: #{tpu_custom_call.1} parent=5 // pred_region
        %s213 = ssub.s32 %s21, 1
        // Predicated region
        $region13: #{tpu_custom_call.1} parent=11 // pred_check
          %p214 = pneg %p108
        $region14: #{tpu_custom_call.1} parent=11 // pred_check_branch
          %216 = sbr.rel (%p214) target = $region16
        $region15: #{tpu_custom_call.1} parent=11 // pred_region
          _
        $region16: #{tpu_custom_call.1} parent=11 // pred_fallthru
          _
        // Predicated region
        $region17: #{tpu_custom_call.1} parent=11 // pred_check
          %p217 = pneg %p129
        $region18: #{tpu_custom_call.1} parent=11 // pred_check_branch
          %219 = sbr.rel (%p217) target = $region20
        $region19: #{tpu_custom_call.1} parent=11 // pred_region
          _
        $region20: #{tpu_custom_call.1} parent=11 // pred_fallthru
          _
        // Predicated region
        $region21: #{tpu_custom_call.1} parent=11 // pred_check
          %p220 = pneg %p150
        $region22: #{tpu_custom_call.1} parent=11 // pred_check_branch
          %222 = sbr.rel (%p220) target = $region24
        $region23: #{tpu_custom_call.1} parent=11 // pred_region
          _
        $region24: #{tpu_custom_call.1} parent=11 // pred_fallthru
          _
        // Predicated region
        $region25: #{tpu_custom_call.1} parent=11 // pred_check
          %p223 = pneg %p171
        $region26: #{tpu_custom_call.1} parent=11 // pred_check_branch
          %225 = sbr.rel (%p223) target = $region28
        $region27: #{tpu_custom_call.1} parent=11 // pred_region
          _
        $region28: #{tpu_custom_call.1} parent=11 // pred_fallthru
          _
      $region12: #{tpu_custom_call.1} parent=5 // pred_fallthru
        _
      %p226 = scmp.lt.s32.totalorder %s21, 8
      // Predicated region
      $region29: #{tpu_custom_call.1} parent=5 // pred_check
        %p227 = pneg %p226
      $region30: #{tpu_custom_call.1} parent=5 // pred_check_branch
        %229 = sbr.rel (%p227) target = $region32
      $region31: #{tpu_custom_call.1} parent=5 // pred_region
        // Predicated region
        $region33: #{tpu_custom_call.1} parent=31 // pred_check
          %p230 = pneg %p55
        $region34: #{tpu_custom_call.1} parent=31 // pred_check_branch
          %232 = sbr.rel (%p230) target = $region36
        $region35: #{tpu_custom_call.1} parent=31 // pred_region
          %s233 = sand.u32 %s45, 1
          %s234 = scalar_lea.sflag [#allocation3], %s233
          %s235 = sand.u32 %s45, 1
          %s236 = smul.addr %s235, 8
          %s237 = scalar_lea.vmem [#allocation2], %s236
          %s239 = ssub.s32 128, 128
          %240 = vsyncadd %s234, %s239
          %s241 = smul.addr %s28, 4
          %s242 = sadd.s32 %s29, %s241
          %s243 = smul.addr %s242, 128
          %s244 = scalar_lea.hbm %s0, %s243
          %s246 = sshll.u32 %s237, 4
          %s247 = int_to_ptr.vmem [resolvable:$true] %s246
          %249 = dma.hbm_to_vmem [thread:$0]  %s244, 128, %s247, %s234
        $region36: #{tpu_custom_call.1} parent=31 // pred_fallthru
          _
        // Predicated region
        $region37: #{tpu_custom_call.1} parent=31 // pred_check
          %p250 = pneg %p81
        $region38: #{tpu_custom_call.1} parent=31 // pred_check_branch
          %252 = sbr.rel (%p250) target = $region40
        $region39: #{tpu_custom_call.1} parent=31 // pred_region
          %s253 = sand.u32 %s71, 1
          %s254 = scalar_lea.sflag [#allocation6], %s253
          %s255 = sand.u32 %s71, 1
          %s256 = smul.addr %s255, 32
          %s257 = scalar_lea.vmem [#allocation5], %s256
          %s259 = ssub.s32 512, 512
          %260 = vsyncadd %s254, %s259
          %s261 = smul.addr %s28, 4
          %s262 = smul.addr %s261, 128
          %s263 = scalar_lea.hbm %s1, %s262
          %s264 = sshll.u32 %s257, 4
          %s265 = int_to_ptr.vmem [resolvable:$true] %s264
          %270 = dma.hbm_to_vmem [thread:$0]  %s263, 512, %s265, %s254, 128, 128, 8
        $region40: #{tpu_custom_call.1} parent=31 // pred_fallthru
          _
      $region32: #{tpu_custom_call.1} parent=5 // pred_fallthru
        _
      %p271 = scmp.le.s32.totalorder 1, %s21
      %p272 = scmp.lt.s32.totalorder %s21, 9
      %p273 = pnand %p271, %p272
      %p274 = pneg %p273
      // Predicated region
      $region41: #{tpu_custom_call.1} parent=5 // pred_check
        _
      $region42: #{tpu_custom_call.1} parent=5 // pred_check_branch
        %276 = sbr.rel (%p273) target = $region44
      $region43: #{tpu_custom_call.1} parent=5 // pred_region
        %s277 = ssub.s32 %s21, 1
        %s278 = sand.u32 %s48, 1
        %s279 = scalar_lea.sflag [#allocation3], %s278
        %s280 = sand.u32 %s48, 1
        %s281 = smul.addr %s280, 8
        %s282 = scalar_lea.vmem [#allocation2], %s281
        // Predicated region
        $region45: #{tpu_custom_call.1} parent=43 // pred_check
          %p283 = pneg %p61
        $region46: #{tpu_custom_call.1} parent=43 // pred_check_branch
          %285 = sbr.rel (%p283) target = $region48
        $region47: #{tpu_custom_call.1} parent=43 // pred_region
          %286 = dma.done %s279, 128
        $region48: #{tpu_custom_call.1} parent=43 // pred_fallthru
          _
        %s287 = sand.u32 %s74, 1
        %s288 = scalar_lea.sflag [#allocation6], %s287
        %s289 = sand.u32 %s74, 1
        %s290 = smul.addr %s289, 32
        %s291 = scalar_lea.vmem [#allocation5], %s290
        // Predicated region
        $region49: #{tpu_custom_call.1} parent=43 // pred_check
          %p292 = pneg %p87
        $region50: #{tpu_custom_call.1} parent=43 // pred_check_branch
          %294 = sbr.rel (%p292) target = $region52
        $region51: #{tpu_custom_call.1} parent=43 // pred_region
          %295 = dma.done %s288, 512
        $region52: #{tpu_custom_call.1} parent=43 // pred_fallthru
          _
        %s296 = sand.u32 %s48, 1
        %s297 = scalar_lea.sflag [#allocation3], %s296
        %s298 = sand.u32 %s48, 1
        %s299 = smul.addr %s298, 8
        %s300 = scalar_lea.vmem [#allocation2], %s299
        %p301 = pneg %p61
        %p302 = pneg %p58
        %s303 = sand.u32 %s74, 1
        %s304 = scalar_lea.sflag [#allocation6], %s303
        %s305 = sand.u32 %s74, 1
        %s306 = smul.addr %s305, 32
        %s307 = scalar_lea.vmem [#allocation5], %s306
        %p308 = pneg %p87
        %p309 = pneg %p84
        %p310 = pneg %p108
        %p311 = pneg %p105
        %p312 = pneg %p129
        %p313 = pneg %p126
        %p314 = pneg %p150
        %p315 = pneg %p147
        %p316 = pneg %p171
        %p317 = pneg %p168
        %p318 = pneg %p199
        %p319 = pneg %p196
        %s320 = sand.u32 %s186, 1
        %s321 = scalar_lea.sflag [#allocation4], %s320
        %s322 = sand.u32 %s186, 1
        %s323 = smul.addr %s322, 8
        %s324 = scalar_lea.vmem [#allocation7], %s323
        %s326 = smul.u32 %s31, 128
        %v327 = vld [vmem:[%s3] sm:$0xff]
        %v328 = vld [vmem:[%s5] sm:$0xff]
        %v329 = vld [vmem:[%s282] sm:$0xff]
        %v330 = vmul.f32 %v329, 0.1
        %v331 = vmax.f32 %v329, %v330
        %v332 = vpack.c.bf16 %v331, %v331
        %334 = vrot.lane.b32.xlu0 %v332, 1
        %v335 = vpop.permute.xlu0 %334
        %337 = vrot.lane.b32.xlu0 %v332, 127
        %v338 = vpop.permute.xlu0 %337
        %v340 = vrot.slane %v332, 4
        %vm341 = vcmask 1043456
        %v343 = vsel %vm341, %v335, %v340
        %v345 = vld [vmem:[%s2] sm:$0xf]
        %347 = vset.pattern.permute.xlu0 0
        %348 = vperm.xlu0 %347, %v327
        %v349 = vpop.permute.xlu0 %348
        %vm351 = vcmask 195584
        %v353 = vsel %vm351, %v345, 0
        %v355 = vsel %vm341, %v338, 0
        %357 = vmatprep.subr.bf16.mxu0 0
        %358 = vmatpush1.bf16.msra.mxu0 %v343
        %359 = vmatprep.subr.bf16.mxu0 0
        %360 = vmatpush1.bf16.msra.mxu0 %v355
        %361 = vmatprep.subr.bf16.mxu0 0
        %362 = vmatpush1.bf16.msra.mxu0 0
        %363 = vmatprep.subr.bf16.mxu0 0
        %364 = vmatpush1.bf16.msra.mxu0 0
        %365 = vmatprep.subr.bf16.mxu0 0
        %366 = vmatpush1.bf16.msra.mxu0 0
        %367 = vmatprep.subr.bf16.mxu0 0
        %368 = vmatpush1.bf16.msra.mxu0 0
        %369 = vmatprep.subr.bf16.mxu0 0
        %370 = vmatpush1.bf16.msra.mxu0 0
        %371 = vmatprep.subr.bf16.mxu0 0
        %372 = vmatpush1.bf16.msra.mxu0 0
        %373 = vmatprep.subr.bf16.mxu0 0
        %374 = vmatpush1.bf16.msra.mxu0 0
        %375 = vmatprep.subr.bf16.mxu0 0
        %376 = vmatpush1.bf16.msra.mxu0 0
        %377 = vmatprep.subr.bf16.mxu0 0
        %378 = vmatpush1.bf16.msra.mxu0 0
        %379 = vmatprep.subr.bf16.mxu0 0
        %380 = vmatpush1.bf16.msra.mxu0 0
        %381 = vmatprep.subr.bf16.mxu0 0
        %382 = vmatpush1.bf16.msra.mxu0 0
        %383 = vmatprep.subr.bf16.mxu0 0
        %384 = vmatpush1.bf16.msra.mxu0 0
        %385 = vmatprep.subr.bf16.mxu0 0
        %386 = vmatpush1.bf16.msra.mxu0 0
        %387 = vmatprep.subr.bf16.mxu0 0
        %388 = vmatpush1.bf16.msra.mxu0 0
        %389 = vmatprep.mubr.bf16.mxu0 0
        %390 = vmatmul.mubr.bf16.gmra.mrb[0].mxu0 %v353
        %v391 = vpop.f32.mrb[0].mxu0
        %v392 = vadd.f32 %v349, %v391
        %v393 = vpop.f32.mrb[0].mxu0
        %v394 = vpop.f32.mrb[0].mxu0
        %v395 = vpop.f32.mrb[0].mxu0
        %396 = vdwg.mxu0
        %v397 = vadd.f32 %v392, %v329
        %v398 = vmul.f32 %v397, 0.1
        %v399 = vmax.f32 %v397, %v398
        %v400 = vpack.c.bf16 %v399, %v399
        %402 = vrot.lane.b32.xlu0 %v400, 3
        %v403 = vpop.permute.xlu0 %402
        %405 = vrot.lane.b32.xlu0 %v400, 125
        %v406 = vpop.permute.xlu0 %405
        %v408 = vrot.slane %v400, 4
        %v410 = vsel %vm341, %v403, %v408
        %v412 = vld [vmem:[%s4] sm:$0xf]
        %414 = vset.pattern.permute.xlu0 0
        %415 = vperm.xlu0 %414, %v328
        %v416 = vpop.permute.xlu0 %415
        %v419 = vsel %vm351, %v412, 0
        %v421 = vsel %vm341, %v406, 0
        %423 = vmatprep.subr.bf16.mxu0 0
        %424 = vmatpush1.bf16.msra.mxu0 %v410
        %425 = vmatprep.subr.bf16.mxu0 0
        %426 = vmatpush1.bf16.msra.mxu0 %v421
        %427 = vmatprep.subr.bf16.mxu0 0
        %428 = vmatpush1.bf16.msra.mxu0 0
        %429 = vmatprep.subr.bf16.mxu0 0
        %430 = vmatpush1.bf16.msra.mxu0 0
        %431 = vmatprep.subr.bf16.mxu0 0
        %432 = vmatpush1.bf16.msra.mxu0 0
        %433 = vmatprep.subr.bf16.mxu0 0
        %434 = vmatpush1.bf16.msra.mxu0 0
        %435 = vmatprep.subr.bf16.mxu0 0
        %436 = vmatpush1.bf16.msra.mxu0 0
        %437 = vmatprep.subr.bf16.mxu0 0
        %438 = vmatpush1.bf16.msra.mxu0 0
        %439 = vmatprep.subr.bf16.mxu0 0
        %440 = vmatpush1.bf16.msra.mxu0 0
        %441 = vmatprep.subr.bf16.mxu0 0
        %442 = vmatpush1.bf16.msra.mxu0 0
        %443 = vmatprep.subr.bf16.mxu0 0
        %444 = vmatpush1.bf16.msra.mxu0 0
        %445 = vmatprep.subr.bf16.mxu0 0
        %446 = vmatpush1.bf16.msra.mxu0 0
        %447 = vmatprep.subr.bf16.mxu0 0
        %448 = vmatpush1.bf16.msra.mxu0 0
        %449 = vmatprep.subr.bf16.mxu0 0
        %450 = vmatpush1.bf16.msra.mxu0 0
        %451 = vmatprep.subr.bf16.mxu0 0
        %452 = vmatpush1.bf16.msra.mxu0 0
        %453 = vmatprep.subr.bf16.mxu0 0
        %454 = vmatpush1.bf16.msra.mxu0 0
        %455 = vmatprep.mubr.bf16.mxu0 0
        %456 = vmatmul.mubr.bf16.gmra.mrb[0].mxu0 %v419
        %v457 = vpop.f32.mrb[0].mxu0
        %v458 = vadd.f32 %v416, %v457
        %v459 = vpop.f32.mrb[0].mxu0
        %v460 = vpop.f32.mrb[0].mxu0
        %v461 = vpop.f32.mrb[0].mxu0
        %462 = vdwg.mxu0
        %v463 = vadd.f32 %v458, %v397
        %464 = vst [vmem:[%s324] sm:$0xff] %v463
        %s465 = smul.u32 %s31, 8
        %s466 = scalar_lea.vmem %s291, %s465 [#allocation5]
        %v467 = vld [vmem:[%s466] sm:$0xff]
        %469 = vrot.lane.b32.xlu0 %v329, 4
        %v470 = vpop.permute.xlu0 %469
        %vm472 = vcmask 31744
        %v473 = vsel %vm472, %v467, %v470
        %474 = vrot.lane.b32.xlu0 %v329, 8
        %v475 = vpop.permute.xlu0 %474
        %478 = vrot.lane.b32.xlu0 %v467, 4
        %v479 = vpop.permute.xlu0 %478
        %vm481 = vcmask 64512
        %v482 = vsel %vm481, %v475, %v479
        %v483 = vmul.f32 %v473, 0.1
        %v484 = vmax.f32 %v473, %v483
        %v485 = vpack.c.bf16 %v484, %v484
        %v487 = vrot.slane %v485, 4
        %488 = vrot.lane.b32.xlu0 %v487, 127
        %v489 = vpop.permute.xlu0 %488
        %490 = vrot.lane.b32.xlu0 %v485, 126
        %v491 = vpop.permute.xlu0 %490
        %v494 = vsel %vm341, %v485, %v489
        %v496 = vld [vmem:[%s2] sm:$0xf]
        %v498 = vsel %vm351, %v496, 0
        %v501 = vsel %vm341, %v491, 0
        %503 = vmatprep.subr.bf16.mxu0 0
        %504 = vmatpush1.bf16.msra.mxu0 %v494
        %505 = vmatprep.subr.bf16.mxu0 0
        %506 = vmatpush1.bf16.msra.mxu0 %v501
        %507 = vmatprep.subr.bf16.mxu0 0
        %508 = vmatpush1.bf16.msra.mxu0 0
        %509 = vmatprep.subr.bf16.mxu0 0
        %510 = vmatpush1.bf16.msra.mxu0 0
        %511 = vmatprep.subr.bf16.mxu0 0
        %512 = vmatpush1.bf16.msra.mxu0 0
        %513 = vmatprep.subr.bf16.mxu0 0
        %514 = vmatpush1.bf16.msra.mxu0 0
        %515 = vmatprep.subr.bf16.mxu0 0
        %516 = vmatpush1.bf16.msra.mxu0 0
        %517 = vmatprep.subr.bf16.mxu0 0
        %518 = vmatpush1.bf16.msra.mxu0 0
        %519 = vmatprep.subr.bf16.mxu0 0
        %520 = vmatpush1.bf16.msra.mxu0 0
        %521 = vmatprep.subr.bf16.mxu0 0
        %522 = vmatpush1.bf16.msra.mxu0 0
        %523 = vmatprep.subr.bf16.mxu0 0
        %524 = vmatpush1.bf16.msra.mxu0 0
        %525 = vmatprep.subr.bf16.mxu0 0
        %526 = vmatpush1.bf16.msra.mxu0 0
        %527 = vmatprep.subr.bf16.mxu0 0
        %528 = vmatpush1.bf16.msra.mxu0 0
        %529 = vmatprep.subr.bf16.mxu0 0
        %530 = vmatpush1.bf16.msra.mxu0 0
        %531 = vmatprep.subr.bf16.mxu0 0
        %532 = vmatpush1.bf16.msra.mxu0 0
        %533 = vmatprep.subr.bf16.mxu0 0
        %534 = vmatpush1.bf16.msra.mxu0 0
        %535 = vmatprep.mubr.bf16.mxu0 0
        %536 = vmatmul.mubr.bf16.gmra.mrb[0].mxu0 %v498
        %v537 = vpop.f32.mrb[0].mxu0
        %v538 = vadd.f32 %v349, %v537
        %v539 = vpop.f32.mrb[0].mxu0
        %v540 = vpop.f32.mrb[0].mxu0
        %v541 = vpop.f32.mrb[0].mxu0
        %542 = vdwg.mxu0
        %544 = vrot.lane.b32.xlu0 %v473, 127
        %v545 = vpop.permute.xlu0 %544
        %v547 = vadd.f32 %v538, %v545
        %v548 = vlaneseq
        %v549 = vand.u32 %v548, 127
        %s550 = sadd.s32 %s326, 4294967293
        %v551 = vstv %s550
        %v552 = vadd.s32 %v549, %v551
        %vm553 = vcmp.ge.s32.totalorder %v552, 0
        %vm554 = vcmp.lt.s32.totalorder %v552, 512
        %vm555 = vmand %vm553, %vm554
        %v556 = vmul.f32 %v547, 0.1
        %v557 = vmax.f32 %v547, %v556
        %v558 = vsel %vm555, 1, 0
        %vm559 = vcmp.eq.s32.totalorder %v558, 1
        %v560 = vsel %vm559, %v557, 0.0
        %v561 = vpack.c.bf16 %v560, %v560
        %v563 = vrot.slane %v561, 4
        %564 = vrot.lane.b32.xlu0 %v563, 125
        %v565 = vpop.permute.xlu0 %564
        %566 = vrot.lane.b32.xlu0 %v561, 122
        %v567 = vpop.permute.xlu0 %566
        %v570 = vsel %vm341, %v561, %v565
        %v572 = vld [vmem:[%s4] sm:$0xf]
        %v574 = vsel %vm351, %v572, 0
        %v577 = vsel %vm341, %v567, 0
        %579 = vmatprep.subr.bf16.mxu0 0
        %580 = vmatpush1.bf16.msra.mxu0 %v570
        %581 = vmatprep.subr.bf16.mxu0 0
        %582 = vmatpush1.bf16.msra.mxu0 %v577
        %583 = vmatprep.subr.bf16.mxu0 0
        %584 = vmatpush1.bf16.msra.mxu0 0
        %585 = vmatprep.subr.bf16.mxu0 0
        %586 = vmatpush1.bf16.msra.mxu0 0
        %587 = vmatprep.subr.bf16.mxu0 0
        %588 = vmatpush1.bf16.msra.mxu0 0
        %589 = vmatprep.subr.bf16.mxu0 0
        %590 = vmatpush1.bf16.msra.mxu0 0
        %591 = vmatprep.subr.bf16.mxu0 0
        %592 = vmatpush1.bf16.msra.mxu0 0
        %593 = vmatprep.subr.bf16.mxu0 0
        %594 = vmatpush1.bf16.msra.mxu0 0
        %595 = vmatprep.subr.bf16.mxu0 0
        %596 = vmatpush1.bf16.msra.mxu0 0
        %597 = vmatprep.subr.bf16.mxu0 0
        %598 = vmatpush1.bf16.msra.mxu0 0
        %599 = vmatprep.subr.bf16.mxu0 0
        %600 = vmatpush1.bf16.msra.mxu0 0
        %601 = vmatprep.subr.bf16.mxu0 0
        %602 = vmatpush1.bf16.msra.mxu0 0
        %603 = vmatprep.subr.bf16.mxu0 0
        %604 = vmatpush1.bf16.msra.mxu0 0
        %605 = vmatprep.subr.bf16.mxu0 0
        %606 = vmatpush1.bf16.msra.mxu0 0
        %607 = vmatprep.subr.bf16.mxu0 0
        %608 = vmatpush1.bf16.msra.mxu0 0
        %609 = vmatprep.subr.bf16.mxu0 0
        %610 = vmatpush1.bf16.msra.mxu0 0
        %611 = vmatprep.mubr.bf16.mxu0 0
        %612 = vmatmul.mubr.bf16.gmra.mrb[0].mxu0 %v574
        %v613 = vpop.f32.mrb[0].mxu0
        %v614 = vadd.f32 %v416, %v613
        %v615 = vpop.f32.mrb[0].mxu0
        %v616 = vpop.f32.mrb[0].mxu0
        %v617 = vpop.f32.mrb[0].mxu0
        %618 = vdwg.mxu0
        %620 = vrot.lane.b32.xlu0 %v547, 125
        %v621 = vpop.permute.xlu0 %620
        %v623 = vadd.f32 %v614, %v621
        %624 = vst.msk [vmem:[%s324] sm:$0xff] %vm472, %v623
        %v625 = vmul.f32 %v482, 0.1
        %v626 = vmax.f32 %v482, %v625
        %v627 = vpack.c.bf16 %v626, %v626
        %v629 = vrot.slane %v627, 4
        %630 = vrot.lane.b32.xlu0 %v629, 127
        %v631 = vpop.permute.xlu0 %630
        %632 = vrot.lane.b32.xlu0 %v627, 126
        %v633 = vpop.permute.xlu0 %632
        %v636 = vsel %vm341, %v627, %v631
        %v638 = vld [vmem:[%s2] sm:$0xf]
        %v640 = vsel %vm351, %v638, 0
        %v643 = vsel %vm341, %v633, 0
        %645 = vmatprep.subr.bf16.mxu0 0
        %646 = vmatpush1.bf16.msra.mxu0 %v636
        %647 = vmatprep.subr.bf16.mxu0 0
        %648 = vmatpush1.bf16.msra.mxu0 %v643
        %649 = vmatprep.subr.bf16.mxu0 0
        %650 = vmatpush1.bf16.msra.mxu0 0
        %651 = vmatprep.subr.bf16.mxu0 0
        %652 = vmatpush1.bf16.msra.mxu0 0
        %653 = vmatprep.subr.bf16.mxu0 0
        %654 = vmatpush1.bf16.msra.mxu0 0
        %655 = vmatprep.subr.bf16.mxu0 0
        %656 = vmatpush1.bf16.msra.mxu0 0
        %657 = vmatprep.subr.bf16.mxu0 0
        %658 = vmatpush1.bf16.msra.mxu0 0
        %659 = vmatprep.subr.bf16.mxu0 0
        %660 = vmatpush1.bf16.msra.mxu0 0
        %661 = vmatprep.subr.bf16.mxu0 0
        %662 = vmatpush1.bf16.msra.mxu0 0
        %663 = vmatprep.subr.bf16.mxu0 0
        %664 = vmatpush1.bf16.msra.mxu0 0
        %665 = vmatprep.subr.bf16.mxu0 0
        %666 = vmatpush1.bf16.msra.mxu0 0
        %667 = vmatprep.subr.bf16.mxu0 0
        %668 = vmatpush1.bf16.msra.mxu0 0
        %669 = vmatprep.subr.bf16.mxu0 0
        %670 = vmatpush1.bf16.msra.mxu0 0
        %671 = vmatprep.subr.bf16.mxu0 0
        %672 = vmatpush1.bf16.msra.mxu0 0
        %673 = vmatprep.subr.bf16.mxu0 0
        %674 = vmatpush1.bf16.msra.mxu0 0
        %675 = vmatprep.subr.bf16.mxu0 0
        %676 = vmatpush1.bf16.msra.mxu0 0
        %677 = vmatprep.mubr.bf16.mxu0 0
        %678 = vmatmul.mubr.bf16.gmra.mrb[0].mxu0 %v640
        %v679 = vpop.f32.mrb[0].mxu0
        %v680 = vadd.f32 %v349, %v679
        %v681 = vpop.f32.mrb[0].mxu0
        %v682 = vpop.f32.mrb[0].mxu0
        %v683 = vpop.f32.mrb[0].mxu0
        %684 = vdwg.mxu0
        %686 = vrot.lane.b32.xlu0 %v482, 127
        %v687 = vpop.permute.xlu0 %686
        %v689 = vadd.f32 %v680, %v687
        %s690 = sadd.s32 %s326, 121
        %v691 = vstv %s690
        %v692 = vadd.s32 %v549, %v691
        %vm693 = vcmp.ge.s32.totalorder %v692, 0
        %vm694 = vcmp.lt.s32.totalorder %v692, 512
        %vm695 = vmand %vm693, %vm694
        %v696 = vmul.f32 %v689, 0.1
        %v697 = vmax.f32 %v689, %v696
        %v698 = vsel %vm695, 1, 0
        %vm699 = vcmp.eq.s32.totalorder %v698, 1
        %v700 = vsel %vm699, %v697, 0.0
        %v701 = vpack.c.bf16 %v700, %v700
        %v703 = vrot.slane %v701, 4
        %704 = vrot.lane.b32.xlu0 %v703, 125
        %v705 = vpop.permute.xlu0 %704
        %706 = vrot.lane.b32.xlu0 %v701, 122
        %v707 = vpop.permute.xlu0 %706
        %v710 = vsel %vm341, %v701, %v705
        %v712 = vld [vmem:[%s4] sm:$0xf]
        %v714 = vsel %vm351, %v712, 0
        %v717 = vsel %vm341, %v707, 0
        %719 = vmatprep.subr.bf16.mxu0 0
        %720 = vmatpush1.bf16.msra.mxu0 %v710
        %721 = vmatprep.subr.bf16.mxu0 0
        %722 = vmatpush1.bf16.msra.mxu0 %v717
        %723 = vmatprep.subr.bf16.mxu0 0
        %724 = vmatpush1.bf16.msra.mxu0 0
        %725 = vmatprep.subr.bf16.mxu0 0
        %726 = vmatpush1.bf16.msra.mxu0 0
        %727 = vmatprep.subr.bf16.mxu0 0
        %728 = vmatpush1.bf16.msra.mxu0 0
        %729 = vmatprep.subr.bf16.mxu0 0
        %730 = vmatpush1.bf16.msra.mxu0 0
        %731 = vmatprep.subr.bf16.mxu0 0
        %732 = vmatpush1.bf16.msra.mxu0 0
        %733 = vmatprep.subr.bf16.mxu0 0
        %734 = vmatpush1.bf16.msra.mxu0 0
        %735 = vmatprep.subr.bf16.mxu0 0
        %736 = vmatpush1.bf16.msra.mxu0 0
        %737 = vmatprep.subr.bf16.mxu0 0
        %738 = vmatpush1.bf16.msra.mxu0 0
        %739 = vmatprep.subr.bf16.mxu0 0
        %740 = vmatpush1.bf16.msra.mxu0 0
        %741 = vmatprep.subr.bf16.mxu0 0
        %742 = vmatpush1.bf16.msra.mxu0 0
        %743 = vmatprep.subr.bf16.mxu0 0
        %744 = vmatpush1.bf16.msra.mxu0 0
        %745 = vmatprep.subr.bf16.mxu0 0
        %746 = vmatpush1.bf16.msra.mxu0 0
        %747 = vmatprep.subr.bf16.mxu0 0
        %748 = vmatpush1.bf16.msra.mxu0 0
        %749 = vmatprep.subr.bf16.mxu0 0
        %750 = vmatpush1.bf16.msra.mxu0 0
        %751 = vmatprep.mubr.bf16.mxu0 0
        %752 = vmatmul.mubr.bf16.gmra.mrb[0].mxu0 %v714
        %v753 = vpop.f32.mrb[0].mxu0
        %v754 = vadd.f32 %v416, %v753
        %v755 = vpop.f32.mrb[0].mxu0
        %v756 = vpop.f32.mrb[0].mxu0
        %v757 = vpop.f32.mrb[0].mxu0
        %758 = vdwg.mxu0
        %760 = vrot.lane.b32.xlu0 %v689, 125
        %v761 = vpop.permute.xlu0 %760
        %v763 = vadd.f32 %v754, %v761
        %765 = vrot.lane.b32.xlu0 %v763, 124
        %v766 = vpop.permute.xlu0 %765
        %vm768 = vcmask 1048544
        %769 = vst.msk [vmem:[%s324] sm:$0xff] %vm768, %v766
        %s770 = sand.u32 %s186, 1
        %s771 = scalar_lea.sflag [#allocation4], %s770
        %s772 = sand.u32 %s186, 1
        %s773 = smul.addr %s772, 8
        %s774 = scalar_lea.vmem [#allocation7], %s773
        // Predicated region
        $region53: #{tpu_custom_call.1} parent=43 // pred_check
          %p775 = pneg %p196
        $region54: #{tpu_custom_call.1} parent=43 // pred_check_branch
          %777 = sbr.rel (%p775) target = $region56
        $region55: #{tpu_custom_call.1} parent=43 // pred_region
          %s779 = ssub.s32 128, 128
          %780 = vsyncadd %s771, %s779
          %s781 = smul.addr %s30, 4
          %s782 = sadd.s32 %s31, %s781
          %s783 = smul.addr %s782, 128
          %s784 = scalar_lea.hbm %s6, %s783
          %s786 = sshll.u32 %s774, 4
          %s787 = int_to_ptr.vmem [resolvable:$true] %s786
          %789 = dma.vmem_to_hbm [thread:$0]  %s787, 128, %s784, %s771
        $region56: #{tpu_custom_call.1} parent=43 // pred_fallthru
          _
      $region44: #{tpu_custom_call.1} parent=5 // pred_fallthru
        _
      %p790 = scmp.le.s32.totalorder 2, %s21
      // Predicated region
      $region57: #{tpu_custom_call.1} parent=5 // pred_check
        %p791 = pneg %p790
      $region58: #{tpu_custom_call.1} parent=5 // pred_check_branch
        %793 = sbr.rel (%p791) target = $region60
      $region59: #{tpu_custom_call.1} parent=5 // pred_region
        %s794 = ssub.s32 %s21, 2
        // Predicated region
        $region61: #{tpu_custom_call.1} parent=59 // pred_check
          %p795 = pneg %p202
        $region62: #{tpu_custom_call.1} parent=59 // pred_check_branch
          %797 = sbr.rel (%p795) target = $region64
        $region63: #{tpu_custom_call.1} parent=59 // pred_region
          %s798 = sand.u32 %s187, 1
          %s799 = scalar_lea.sflag [#allocation4], %s798
          %s800 = sand.u32 %s187, 1
          %s801 = smul.addr %s800, 8
          %s802 = scalar_lea.vmem [#allocation7], %s801
          %803 = dma.done %s799, 128
        $region64: #{tpu_custom_call.1} parent=59 // pred_fallthru
          _
      $region60: #{tpu_custom_call.1} parent=5 // pred_fallthru
        _
    $region6: #{tpu_custom_call.1} parent=1 // loop_footer
      %s25 = sadd.s32 1, %s21
    $region7: #{tpu_custom_call.1} parent=1 // loop_footer_branch
      %20 = sbr.rel target = $region3
    $region8: #{tpu_custom_call.1} parent=1 // loop_exit
      _
    %804 = vsyncpa [#allocation3], 1
    %s805 = scalar_lea.sflag [#allocation3], 1
    %806 = vsyncpa %s805, 1
    %807 = vsyncpa [#allocation6], 1
    %s808 = scalar_lea.sflag [#allocation6], 1
    %809 = vsyncpa %s808, 1
    %810 = vsyncpa [#allocation4], 1
    %s811 = scalar_lea.sflag [#allocation4], 1
    %812 = vsyncpa %s811, 1

</llo_original>
